<compile_context>
chip_gen: v7x
topology: tpu7x:2x2x1
jax: 0.10.0
libtpu: 0.0.40
codegen_flags: <defaults>
</compile_context>

<pallas_src>
import jax
import jax.numpy as jnp
from jax.experimental import pallas as pl
from jax.experimental.pallas import tpu as pltpu

_LANE = 128
_SUB = 8
_MAX_ROWS_PER_BLOCK = 512  # 512 * 128 * 3ch * 4B = 768 KiB input per block


def _choose_tiling(hw):
    """Return (hw_padded, rows, rows_per_block) for a flattened spatial dim."""
    rows = -(-hw // _LANE)  # ceil div
    if rows <= _MAX_ROWS_PER_BLOCK:
        # Single spatial block per batch element; a full-extent sublane dim is
        # legal even when it is not a multiple of 8.
        block_rows = rows
    else:
        # Pad rows to a multiple of 8, then pick the largest divisor <= 512
        # that is a multiple of 8 so every block is sublane-dense.
        rows = -(-rows // _SUB) * _SUB
        block_rows = _MAX_ROWS_PER_BLOCK
        while rows % block_rows:
            block_rows -= _SUB
    return rows * _LANE, rows, block_rows


def _spatial_attn_kernel(w_ref, b_ref, x_ref, o_ref):
    # w_ref: SMEM (3,) f32     -- 1x1 conv weights (out=1, in=3)
    # b_ref: SMEM (1,) f32     -- conv bias
    # x_ref: VMEM (3, S, 128)  -- one (batch, spatial-tile) block
    # o_ref: VMEM (S, 128)
    # Stay in the native 2D (sublane, lane) layout; 3-term VPU multiply-add.
    x0 = x_ref[0].astype(jnp.float32)
    x1 = x_ref[1].astype(jnp.float32)
    x2 = x_ref[2].astype(jnp.float32)
    acc = x0 * w_ref[0] + x1 * w_ref[1] + x2 * w_ref[2] + b_ref[0]
    o_ref[...] = jax.nn.sigmoid(acc).astype(o_ref.dtype)


def spatial_attention(x, weight, bias):
    """x: (N, 3, H, W) float32/bfloat16. weight: (1, 3, 1, 1). bias: (1,).

    Returns sigmoid(conv1x1(x)) of shape (N, 1, H, W), same dtype as x.
    """
    N, C, H, W = x.shape
    assert C == 3, "SpatialAttention expects 3 input channels"
    HW = H * W
    HW_pad, R, S = _choose_tiling(HW)

    x_flat = x.reshape(N, C, HW)
    if HW_pad != HW:
        x_flat = jnp.pad(x_flat, ((0, 0), (0, 0), (0, HW_pad - HW)))
    x_tiled = x_flat.reshape(N, C, R, _LANE)

    w_flat = weight.reshape(3).astype(jnp.float32)
    b_flat = bias.reshape(1).astype(jnp.float32)

    grid = (N, R // S)

    out_tiled = pl.pallas_call(
        _spatial_attn_kernel,
        out_shape=jax.ShapeDtypeStruct((N, R, _LANE), x.dtype),
        grid=grid,
        in_specs=[
            pl.BlockSpec(memory_space=pltpu.MemorySpace.SMEM),      # weights
            pl.BlockSpec(memory_space=pltpu.MemorySpace.SMEM),      # bias
            pl.BlockSpec((None, C, S, _LANE), lambda n, s: (n, 0, s, 0)),
        ],
        out_specs=pl.BlockSpec((None, S, _LANE), lambda n, s: (n, s, 0)),
        compiler_params=pltpu.CompilerParams(
            dimension_semantics=("parallel", "parallel")),
    )(w_flat, b_flat, x_tiled)

    out_flat = out_tiled.reshape(N, HW_pad)[:, :HW]
    return out_flat.reshape(N, 1, H, W)


def _reference(x, weight, bias):
    return jax.nn.sigmoid(
        jnp.einsum("nchw,oc->nohw", x.astype(jnp.float32),
                   weight.reshape(1, 3).astype(jnp.float32))
        + bias.reshape(1, 1, 1, 1).astype(jnp.float32)
    ).astype(x.dtype)


if __name__ == "__main__":
    key = jax.random.PRNGKey(0)
    kx, kw, kb, kx2 = jax.random.split(key, 4)

    # Deterministic parameter init (Conv2d(3, 1, kernel_size=1) shapes).
    weight = jax.random.normal(kw, (1, 3, 1, 1), dtype=jnp.float32) * 0.1
    bias = jax.random.normal(kb, (1,), dtype=jnp.float32) * 0.1

    # Case 1: H*W a multiple of 128.
    N, C, H, W = 2, 3, 16, 16
    x = jax.random.normal(kx, (N, C, H, W), dtype=jnp.float32)
    out = jax.block_until_ready(spatial_attention(x, weight, bias))
    ref = _reference(x, weight, bias)
    assert out.shape == (N, 1, H, W)
    assert jnp.allclose(out, ref, atol=1e-5, rtol=1e-5)

    # Case 2: H*W not a multiple of 128 (exercises the padding path).
    H2, W2 = 10, 7
    x2 = jax.random.normal(kx2, (N, C, H2, W2), dtype=jnp.float32)
    out2 = jax.block_until_ready(spatial_attention(x2, weight, bias))
    ref2 = _reference(x2, weight, bias)
    assert out2.shape == (N, 1, H2, W2)
    assert jnp.allclose(out2, ref2, atol=1e-5, rtol=1e-5)

    print("KERNEL_OK")
</pallas_src>

<mosaic_0001>
module attributes {stable_mosaic.version = 11 : i64} {
  func.func @_spatial_attn_kernel(%arg0: i32, %arg1: i32, %arg2: memref<3xf32, #tpu.memory_space<smem>>, %arg3: memref<1xf32, #tpu.memory_space<smem>>, %arg4: memref<1x3x2x128xf32, #tpu.memory_space<vmem>>, %arg5: memref<1x2x128xf32, #tpu.memory_space<vmem>>) attributes {dimension_semantics = [#tpu.dimension_semantics<parallel>, #tpu.dimension_semantics<parallel>], iteration_bounds = array<i64: 2, 1>, scalar_prefetch = 0 : i64, scratch_operands = 0 : i64, tpu.core_type = #tpu.core_type<tc>, window_params = [{transform_indices = @transform_0, window_bounds = array<i64: 3>}, {transform_indices = @transform_1, window_bounds = array<i64: 1>}, {transform_indices = @transform_2, window_bounds = array<i64: 1, 3, 2, 128>}, {transform_indices = @transform_3, window_bounds = array<i64: 1, 2, 128>}]} {
    %c0 = arith.constant 0 : index
    %c0_0 = arith.constant 0 : index
    %c0_1 = arith.constant 0 : index
    %c0_2 = arith.constant 0 : index
    %0 = vector.load %arg4[%c0, %c0_0, %c0_1, %c0_2] : memref<1x3x2x128xf32, #tpu.memory_space<vmem>>, vector<1x1x2x128xf32>
    %1 = vector.shape_cast %0 : vector<1x1x2x128xf32> to vector<2x128xf32>
    %c0_3 = arith.constant 0 : index
    %c1 = arith.constant 1 : index
    %c0_4 = arith.constant 0 : index
    %c0_5 = arith.constant 0 : index
    %2 = vector.load %arg4[%c0_3, %c1, %c0_4, %c0_5] : memref<1x3x2x128xf32, #tpu.memory_space<vmem>>, vector<1x1x2x128xf32>
    %3 = vector.shape_cast %2 : vector<1x1x2x128xf32> to vector<2x128xf32>
    %c0_6 = arith.constant 0 : index
    %c2 = arith.constant 2 : index
    %c0_7 = arith.constant 0 : index
    %c0_8 = arith.constant 0 : index
    %4 = vector.load %arg4[%c0_6, %c2, %c0_7, %c0_8] : memref<1x3x2x128xf32, #tpu.memory_space<vmem>>, vector<1x1x2x128xf32>
    %5 = vector.shape_cast %4 : vector<1x1x2x128xf32> to vector<2x128xf32>
    %c0_9 = arith.constant 0 : index
    %6 = memref.load %arg2[%c0_9] : memref<3xf32, #tpu.memory_space<smem>>
    %7 = vector.broadcast %6 : f32 to vector<2x128xf32>
    %8 = arith.mulf %1, %7 : vector<2x128xf32>
    %c1_10 = arith.constant 1 : index
    %9 = memref.load %arg2[%c1_10] : memref<3xf32, #tpu.memory_space<smem>>
    %10 = vector.broadcast %9 : f32 to vector<2x128xf32>
    %11 = arith.mulf %3, %10 : vector<2x128xf32>
    %12 = arith.addf %8, %11 : vector<2x128xf32>
    %c2_11 = arith.constant 2 : index
    %13 = memref.load %arg2[%c2_11] : memref<3xf32, #tpu.memory_space<smem>>
    %14 = vector.broadcast %13 : f32 to vector<2x128xf32>
    %15 = arith.mulf %5, %14 : vector<2x128xf32>
    %16 = arith.addf %12, %15 : vector<2x128xf32>
    %c0_12 = arith.constant 0 : index
    %17 = memref.load %arg3[%c0_12] : memref<1xf32, #tpu.memory_space<smem>>
    %18 = vector.broadcast %17 : f32 to vector<2x128xf32>
    %19 = arith.addf %16, %18 : vector<2x128xf32>
    %20 = arith.negf %19 : vector<2x128xf32>
    %21 = math.exp %20 : vector<2x128xf32>
    %cst = arith.constant 1.000000e+00 : f32
    %22 = vector.broadcast %cst : f32 to vector<2x128xf32>
    %23 = arith.addf %22, %21 : vector<2x128xf32>
    %24 = arith.divf %22, %23 : vector<2x128xf32>
    %c0_13 = arith.constant 0 : index
    %c0_14 = arith.constant 0 : index
    %c0_15 = arith.constant 0 : index
    %25 = vector.load %arg5[%c0_13, %c0_14, %c0_15] : memref<1x2x128xf32, #tpu.memory_space<vmem>>, vector<1x2x128xf32>
    %26 = vector.shape_cast %25 : vector<1x2x128xf32> to vector<2x128xf32>
    %27 = vector.shape_cast %24 : vector<2x128xf32> to vector<1x2x128xf32>
    tpu.vector_store %arg5[%c0_13, %c0_14, %c0_15], %27 {strides = array<i32>} : memref<1x2x128xf32, #tpu.memory_space<vmem>>, vector<1x2x128xf32>,
    return
  }
  func.func @transform_0(%arg0: i32, %arg1: i32) -> i32 {
    %c0_i32 = arith.constant 0 : i32
    %c0_i32_0 = arith.constant 0 : i32
    return %c0_i32 : i32
  }
  func.func @transform_1(%arg0: i32, %arg1: i32) -> i32 {
    %c0_i32 = arith.constant 0 : i32
    %c0_i32_0 = arith.constant 0 : i32
    return %c0_i32 : i32
  }
  func.func @transform_2(%arg0: i32, %arg1: i32) -> (i32, i32, i32, i32) {
    %c0_i32 = arith.constant 0 : i32
    %c0_i32_0 = arith.constant 0 : i32
    %c0_i32_1 = arith.constant 0 : i32
    return %arg0, %c0_i32, %arg1, %c0_i32_0 : i32, i32, i32, i32
  }
  func.func @transform_3(%arg0: i32, %arg1: i32) -> (i32, i32, i32) {
    %c0_i32 = arith.constant 0 : i32
    %c0_i32_0 = arith.constant 0 : i32
    return %arg0, %arg1, %c0_i32 : i32, i32, i32
  }
}

</mosaic_0001>

<llo_original>
// kernel: tpu_custom_call.1
$region0: #{tpu_custom_call.1}
  #allocation0 [shape = 'u32[]', space=smem, size = 0x4, offset = 0x4, fixed_abs, tag = 'smem constant byte address 0x4 - core index']
  #allocation1 [shape = 'u32[144,128]{1,0:T(1,128)}', space=vmem, size = 0x12000, scoped, tag = 'internal scratch']
  #allocation2 [shape = 'f32[1]{0:T(128)S(6)}', space=smem, size = 0x200, scoped, tag = 'scoped memory for tpu_custom_call.1']
  %s0 = inlined_call_operand.vmem [shape: f32[3], index: 0, kind: input, shape index: {}]
  %s1 = inlined_call_operand.<no memory space> [shape: f32[1], index: 1, kind: input, shape index: {}]
  %s2 = inlined_call_operand.hbm [shape: f32[2,3,2,128], index: 2, kind: input, shape index: {}]
  %s3 = inlined_call_operand.hbm [shape: f32[2,2,128], index: 3, kind: output, shape index: {}]
  %s4 = sld [smem:[#allocation0]]
  $region53: #{tpu_custom_call.1} parent=0
    _
  %s6 = ssub.s32 1, %s4
  %s7 = scalar_select 0, %s6, %s4
  %8 = sst [smem:[#allocation2]] %s1
  $region1: #{tpu_custom_call.1} parent=0
    #allocation3 [shape = 'u8[512]{0}', space=smem, size = 0x200, scoped, tag = 'input window, operand 0, single buffered']
    #allocation4 [shape = 's32[2]{0}', space=sflag, size = 0x8, scoped, tag = 'scoped memory for tpu_custom_call.1']
    #allocation5 [shape = 's32[2]{0}', space=sflag, size = 0x8, scoped, tag = 'scoped memory for tpu_custom_call.1']
    #allocation6 [shape = 's32[2]{0}', space=sflag, size = 0x8, scoped, tag = 'scoped memory for tpu_custom_call.1']
    #allocation7 [shape = 'u8[6144]{0}', space=vmem, size = 0x1800, scoped, tag = 'input window, operand 2']
    #allocation8 [shape = 'u8[2048]{0}', space=vmem, size = 0x800, scoped, tag = 'output window, operand 0']
    %9 = vsyncpa [#allocation6], 0
    %10 = vsyncpa [#allocation4], 0
    %s11 = scalar_lea.sflag [#allocation4], 1
    %12 = vsyncpa %s11, 0
    %13 = vsyncpa [#allocation5], 0
    %s14 = scalar_lea.sflag [#allocation5], 1
    %15 = vsyncpa %s14, 0
    loop: start=0, step=1, limit=4
    $region2: #{tpu_custom_call.1} parent=1 // loop_pre_header
      _
    $region3: #{tpu_custom_call.1} parent=1 // loop_header
      %s17 = sphi 0, %s21
      %p18 = scmp.ge.s32.totalorder %s17, 4
      %s24 = sphi 0, %s36
      %s25 = sphi 0, %s32
      %s26 = sphi 0, %s24
      %s27 = sphi 0, %s25
      %s28 = sphi 0, %s26
      %s29 = sphi 0, %s27
      %s37 = sphi 0, %s37
      %s39 = sphi 0, %s37
      %s40 = sphi 0, %s39
      %s54 = sphi 0, %s40
      %s58 = sphi 0, %s58
      %s60 = sphi 0, %s58
      %s61 = sphi 0, %s60
      %s75 = sphi 0, %s61
      %s83 = sphi 0, %s85
      %s86 = sphi 0, %s83
      %s87 = sphi 0, %s86
      %s103 = sphi 0, %s87
      %s111 = sphi 0, %s113
      %s114 = sphi 0, %s111
      %s115 = sphi 0, %s114
      %s131 = sphi 0, %s115
    $region4: #{tpu_custom_call.1} parent=1 // loop_header_branch
      %20 = sbr.rel (%p18) target = $region8
    $region5: #{tpu_custom_call.1} parent=1 // loop_body
      %s22 = ssub.s32 %s17, 1
      %s23 = ssub.s32 %s17, 2
      %s30 = sadd.s32 1, %s25
      %p31 = scmp.ge.s32.totalorder %s30, 1
      %s32 = scalar_select %p31, 0, %s30
      %s33 = sadd.s32 1, %s24
      %s34 = scalar_select %p31, %s33, %s24
      %p35 = scmp.ge.s32.totalorder %s34, 2
      %s36 = scalar_select %p35, 0, %s34
      %s38 = sadd.s32 %s37, 1
      %p41 = scmp.eq.s32.totalorder %s17, 1
      %p42 = scmp.ne.s32.totalorder %s37, %s39
      %p43 = scmp.eq.s32.totalorder %s17, 0
      %p44 = por %p42, %p43
      %p45 = scmp.ne.s32.totalorder %s37, %s39
      %p46 = scmp.eq.s32.totalorder %s22, 1
      %p47 = por %p45, %p46
      %p48 = scmp.ne.s32.totalorder %s39, %s40
      %p49 = scmp.eq.s32.totalorder %s22, 0
      %p50 = por %p48, %p49
      %p51 = scmp.ne.s32.totalorder %s39, %s40
      %p52 = scmp.eq.s32.totalorder %s23, 1
      %p53 = por %p51, %p52
      %p55 = scmp.ne.s32.totalorder %s40, %s54
      %p56 = scmp.eq.s32.totalorder %s23, 0
      %p57 = por %p55, %p56
      %s59 = sadd.s32 %s58, 1
      %p62 = scmp.eq.s32.totalorder %s17, 1
      %p63 = scmp.ne.s32.totalorder %s58, %s60
      %p64 = scmp.eq.s32.totalorder %s17, 0
      %p65 = por %p63, %p64
      %p66 = scmp.ne.s32.totalorder %s58, %s60
      %p67 = scmp.eq.s32.totalorder %s22, 1
      %p68 = por %p66, %p67
      %p69 = scmp.ne.s32.totalorder %s60, %s61
      %p70 = scmp.eq.s32.totalorder %s22, 0
      %p71 = por %p69, %p70
      %p72 = scmp.ne.s32.totalorder %s60, %s61
      %p73 = scmp.eq.s32.totalorder %s23, 1
      %p74 = por %p72, %p73
      %p76 = scmp.ne.s32.totalorder %s61, %s75
      %p77 = scmp.eq.s32.totalorder %s23, 0
      %p78 = por %p76, %p77
      %s79 = ssub.s32 %s24, %s36
      %s80 = ssub.s32 %s25, %s32
      %s81 = sor.u32 %s79, %s80
      %p82 = scmp.eq.s32.totalorder %s81, 0
      %s84 = sadd.s32 %s83, 1
      %s85 = scalar_select %p82, %s83, %s84
      %p88 = pneg %p82
      %p89 = scmp.eq.s32.totalorder %s17, 1
      %p90 = por %p88, %p89
      %p91 = scmp.ne.s32.totalorder %s83, %s86
      %p92 = scmp.eq.s32.totalorder %s17, 0
      %p93 = por %p91, %p92
      %p94 = scmp.ne.s32.totalorder %s83, %s86
      %p95 = scmp.eq.s32.totalorder %s22, 1
      %p96 = por %p94, %p95
      %p97 = scmp.ne.s32.totalorder %s86, %s87
      %p98 = scmp.eq.s32.totalorder %s22, 0
      %p99 = por %p97, %p98
      %p100 = scmp.ne.s32.totalorder %s86, %s87
      %p101 = scmp.eq.s32.totalorder %s23, 1
      %p102 = por %p100, %p101
      %p104 = scmp.ne.s32.totalorder %s87, %s103
      %p105 = scmp.eq.s32.totalorder %s23, 0
      %p106 = por %p104, %p105
      %s107 = ssub.s32 %s24, %s36
      %s108 = ssub.s32 %s25, %s32
      %s109 = sor.u32 %s107, %s108
      %p110 = scmp.eq.s32.totalorder %s109, 0
      %s112 = sadd.s32 %s111, 1
      %s113 = scalar_select %p110, %s111, %s112
      %p116 = pneg %p110
      %p117 = scmp.eq.s32.totalorder %s17, 1
      %p118 = por %p116, %p117
      %p119 = scmp.ne.s32.totalorder %s111, %s114
      %p120 = scmp.eq.s32.totalorder %s17, 0
      %p121 = por %p119, %p120
      %p122 = scmp.ne.s32.totalorder %s111, %s114
      %p123 = scmp.eq.s32.totalorder %s22, 1
      %p124 = por %p122, %p123
      %p125 = scmp.ne.s32.totalorder %s114, %s115
      %p126 = scmp.eq.s32.totalorder %s22, 0
      %p127 = por %p125, %p126
      %p128 = scmp.ne.s32.totalorder %s114, %s115
      %p129 = scmp.eq.s32.totalorder %s23, 1
      %p130 = por %p128, %p129
      %p132 = scmp.ne.s32.totalorder %s115, %s131
      %p133 = scmp.eq.s32.totalorder %s23, 0
      %p134 = por %p132, %p133
      %p135 = scmp.le.s32.totalorder 1, %s17
      %p136 = scmp.lt.s32.totalorder %s17, 3
      %p137 = pnand %p135, %p136
      %p138 = pneg %p137
      // Predicated region
      $region9: #{tpu_custom_call.1} parent=5 // pred_check
        _
      $region10: #{tpu_custom_call.1} parent=5 // pred_check_branch
        %140 = sbr.rel (%p137) target = $region12
      $region11: #{tpu_custom_call.1} parent=5 // pred_region
        %s141 = ssub.s32 %s17, 1
        // Predicated region
        $region13: #{tpu_custom_call.1} parent=11 // pred_check
          %p142 = pneg %p50
        $region14: #{tpu_custom_call.1} parent=11 // pred_check_branch
          %144 = sbr.rel (%p142) target = $region16
        $region15: #{tpu_custom_call.1} parent=11 // pred_region
          %s146 = ssub.s32 16, 16
          %147 = vsyncadd [#allocation6], %s146
          %s149 = sshll.u32 %s0, 4
          %s150 = int_to_ptr.vmem [resolvable:$true] %s149
          %152 = dma.vmem_to_smem %s150, 16, [#allocation3], [#allocation6]
        $region16: #{tpu_custom_call.1} parent=11 // pred_fallthru
          _
        // Predicated region
        $region17: #{tpu_custom_call.1} parent=11 // pred_check
          %p153 = pneg %p71
        $region18: #{tpu_custom_call.1} parent=11 // pred_check_branch
          %155 = sbr.rel (%p153) target = $region20
        $region19: #{tpu_custom_call.1} parent=11 // pred_region
          _
        $region20: #{tpu_custom_call.1} parent=11 // pred_fallthru
          _
      $region12: #{tpu_custom_call.1} parent=5 // pred_fallthru
        _
      %p156 = scmp.lt.s32.totalorder %s17, 2
      // Predicated region
      $region21: #{tpu_custom_call.1} parent=5 // pred_check
        %p157 = pneg %p156
      $region22: #{tpu_custom_call.1} parent=5 // pred_check_branch
        %159 = sbr.rel (%p157) target = $region24
      $region23: #{tpu_custom_call.1} parent=5 // pred_region
        // Predicated region
        $region25: #{tpu_custom_call.1} parent=23 // pred_check
          %p160 = pneg %p93
        $region26: #{tpu_custom_call.1} parent=23 // pred_check_branch
          %162 = sbr.rel (%p160) target = $region28
        $region27: #{tpu_custom_call.1} parent=23 // pred_region
          %s163 = sand.u32 %s83, 1
          %s164 = scalar_lea.sflag [#allocation4], %s163
          %s165 = sand.u32 %s83, 1
          %s166 = smul.addr %s165, 6
          %s167 = scalar_lea.vmem [#allocation7], %s166
          %s169 = ssub.s32 96, 96
          %170 = vsyncadd %s164, %s169
          %s171 = smul.addr %s24, 3
          %s172 = sadd.s32 %s25, %s171
          %s173 = smul.addr %s172, 32
          %s174 = scalar_lea.hbm %s2, %s173
          %s175 = sshll.u32 %s167, 4
          %s176 = int_to_ptr.vmem [resolvable:$true] %s175
          %181 = dma.hbm_to_vmem [thread:$0]  %s174, 96, %s176, %s164, 32, 32, 2
        $region28: #{tpu_custom_call.1} parent=23 // pred_fallthru
          _
      $region24: #{tpu_custom_call.1} parent=5 // pred_fallthru
        _
      %p182 = scmp.le.s32.totalorder 1, %s17
      %p183 = scmp.lt.s32.totalorder %s17, 3
      %p184 = pnand %p182, %p183
      %p185 = pneg %p184
      // Predicated region
      $region29: #{tpu_custom_call.1} parent=5 // pred_check
        _
      $region30: #{tpu_custom_call.1} parent=5 // pred_check_branch
        %187 = sbr.rel (%p184) target = $region32
      $region31: #{tpu_custom_call.1} parent=5 // pred_region
        %s188 = ssub.s32 %s17, 1
        // Predicated region
        $region33: #{tpu_custom_call.1} parent=31 // pred_check
          %p189 = pneg %p50
        $region34: #{tpu_custom_call.1} parent=31 // pred_check_branch
          %191 = sbr.rel (%p189) target = $region36
        $region35: #{tpu_custom_call.1} parent=31 // pred_region
          %192 = dma.done [#allocation6], 16
        $region36: #{tpu_custom_call.1} parent=31 // pred_fallthru
          _
        %s193 = sand.u32 %s86, 1
        %s194 = scalar_lea.sflag [#allocation4], %s193
        %s195 = sand.u32 %s86, 1
        %s196 = smul.addr %s195, 6
        %s197 = scalar_lea.vmem [#allocation7], %s196
        // Predicated region
        $region37: #{tpu_custom_call.1} parent=31 // pred_check
          %p198 = pneg %p99
        $region38: #{tpu_custom_call.1} parent=31 // pred_check_branch
          %200 = sbr.rel (%p198) target = $region40
        $region39: #{tpu_custom_call.1} parent=31 // pred_region
          %201 = dma.done %s194, 96
        $region40: #{tpu_custom_call.1} parent=31 // pred_fallthru
          _
        %202 = sfence
        %p203 = pneg %p50
        %p204 = pneg %p47
        %p205 = pneg %p71
        %p206 = pneg %p68
        %s207 = sand.u32 %s86, 1
        %s208 = scalar_lea.sflag [#allocation4], %s207
        %s209 = sand.u32 %s86, 1
        %s210 = smul.addr %s209, 6
        %s211 = scalar_lea.vmem [#allocation7], %s210
        %p212 = pneg %p99
        %p213 = pneg %p96
        %p214 = pneg %p127
        %p215 = pneg %p124
        %s216 = sand.u32 %s114, 1
        %s217 = scalar_lea.sflag [#allocation5], %s216
        %s218 = sand.u32 %s114, 1
        %s219 = smul.addr %s218, 2
        %s220 = scalar_lea.vmem [#allocation8], %s219
        %v221 = vld [vmem:[%s197] sm:$0x3]
        %s222 = scalar_lea.vmem %s197, 2 [#allocation7]
        %v223 = vld [vmem:[%s222] sm:$0x3]
        %s224 = scalar_lea.vmem %s197, 4 [#allocation7]
        %v225 = vld [vmem:[%s224] sm:$0x3]
        %s226 = sld [smem:[#allocation3]]
        %v227 = vstv %s226
        %v228 = vmul.f32 %v221, %v227
        %s229 = sld [smem:[#allocation3 + $0x1]]
        %v230 = vstv %s229
        %v231 = vmul.f32 %v223, %v230
        %v232 = vadd.f32 %v228, %v231
        %s233 = sld [smem:[#allocation3 + $0x2]]
        %v234 = vstv %s233
        %v235 = vmul.f32 %v225, %v234
        %v236 = vadd.f32 %v232, %v235
        %s237 = sld [smem:[#allocation2]]
        %v238 = vstv %s237
        %v239 = vadd.f32 %v236, %v238
        %v240 = vxor.u32 %v239, 2147483648
        %v241 = vmul.f32 %v240, 1.442695
        %v242 = vpow.pop %v241
        %v243 = vadd.f32 %v242, 1.0
        %v244 = vrcp.pop %v243
        %v245 = vmul.f32 1.0, %v244
        %246 = vst [vmem:[%s220] sm:$0x3] %v245
        %s247 = sand.u32 %s114, 1
        %s248 = scalar_lea.sflag [#allocation5], %s247
        %s249 = sand.u32 %s114, 1
        %s250 = smul.addr %s249, 2
        %s251 = scalar_lea.vmem [#allocation8], %s250
        // Predicated region
        $region41: #{tpu_custom_call.1} parent=31 // pred_check
          %p252 = pneg %p124
        $region42: #{tpu_custom_call.1} parent=31 // pred_check_branch
          %254 = sbr.rel (%p252) target = $region44
        $region43: #{tpu_custom_call.1} parent=31 // pred_region
          %s256 = ssub.s32 32, 32
          %257 = vsyncadd %s248, %s256
          %s258 = sadd.s32 %s27, %s26
          %s259 = smul.addr %s258, 32
          %s260 = scalar_lea.hbm %s3, %s259
          %s262 = sshll.u32 %s251, 4
          %s263 = int_to_ptr.vmem [resolvable:$true] %s262
          %265 = dma.vmem_to_hbm [thread:$0]  %s263, 32, %s260, %s248
        $region44: #{tpu_custom_call.1} parent=31 // pred_fallthru
          _
      $region32: #{tpu_custom_call.1} parent=5 // pred_fallthru
        _
      %p266 = scmp.le.s32.totalorder 2, %s17
      // Predicated region
      $region45: #{tpu_custom_call.1} parent=5 // pred_check
        %p267 = pneg %p266
      $region46: #{tpu_custom_call.1} parent=5 // pred_check_branch
        %269 = sbr.rel (%p267) target = $region48
      $region47: #{tpu_custom_call.1} parent=5 // pred_region
        %s270 = ssub.s32 %s17, 2
        // Predicated region
        $region49: #{tpu_custom_call.1} parent=47 // pred_check
          %p271 = pneg %p130
        $region50: #{tpu_custom_call.1} parent=47 // pred_check_branch
          %273 = sbr.rel (%p271) target = $region52
        $region51: #{tpu_custom_call.1} parent=47 // pred_region
          %s274 = sand.u32 %s115, 1
          %s275 = scalar_lea.sflag [#allocation5], %s274
          %s276 = sand.u32 %s115, 1
          %s277 = smul.addr %s276, 2
          %s278 = scalar_lea.vmem [#allocation8], %s277
          %279 = dma.done %s275, 32
        $region52: #{tpu_custom_call.1} parent=47 // pred_fallthru
          _
      $region48: #{tpu_custom_call.1} parent=5 // pred_fallthru
        _
    $region6: #{tpu_custom_call.1} parent=1 // loop_footer
      %s21 = sadd.s32 1, %s17
    $region7: #{tpu_custom_call.1} parent=1 // loop_footer_branch
      %16 = sbr.rel target = $region3
    $region8: #{tpu_custom_call.1} parent=1 // loop_exit
      _
    %280 = vsyncpa [#allocation4], 1
    %s281 = scalar_lea.sflag [#allocation4], 1
    %282 = vsyncpa %s281, 1
    %283 = vsyncpa [#allocation5], 1
    %s284 = scalar_lea.sflag [#allocation5], 1
    %285 = vsyncpa %s284, 1
    %286 = vsyncpa [#allocation6], 1
    %s287 = scalar_lea.sflag [#allocation6], 1
    %288 = vsyncpa %s287, 1

</llo_original>
